<compile_context>
chip_gen: v7x
topology: tpu7x:2x2x1
jax: 0.10.0
libtpu: 0.0.40
codegen_flags: <defaults>
</compile_context>

<pallas_src>
import jax
import jax.numpy as jnp
import numpy as np
from jax import lax
from jax.experimental import pallas as pl
from jax.experimental.pallas import tpu as pltpu

_LANE = 128  # pad output feature dim to a multiple of 128 for lane-dense stores


def _fc_kernel(x_ref, w_ref, b_ref, o_ref):
    """out = x @ w.T + b in one shot.

    x : (B, K)        bf16
    w : (N_pad, K)    bf16  (PyTorch nn.Linear layout; no wrapper transpose)
    b : (1, N_pad)    f32
    o : (B, N_pad)    f32
    """
    acc = lax.dot_general(
        x_ref[...],
        w_ref[...],
        dimension_numbers=(((1,), (1,)), ((), ())),  # contract K (last dim of both)
        preferred_element_type=jnp.float32,          # f32 accumulation on the MXU
    )
    o_ref[...] = (acc + b_ref[...]).astype(o_ref.dtype)


def linear_pallas(x_flat, weight, bias):
    """out = x_flat @ weight.T + bias  via a single-block Pallas kernel.

    x_flat : (B, K)   float32
    weight : (N, K)   float32  (PyTorch nn.Linear layout)
    bias   : (N,)     float32
    """
    B, K = x_flat.shape
    N = weight.shape[0]
    n_pad = max(_LANE, ((N + _LANE - 1) // _LANE) * _LANE)

    # Lane-dense padding of the output feature dim; zero rows contribute zeros.
    w_p = jnp.pad(weight, ((0, n_pad - N), (0, 0))).astype(jnp.bfloat16)   # (N_pad, K)
    b_p = jnp.pad(bias, (0, n_pad - N)).astype(jnp.float32).reshape(1, n_pad)
    x_bf = x_flat.astype(jnp.bfloat16)

    out_p = pl.pallas_call(
        _fc_kernel,
        out_shape=jax.ShapeDtypeStruct((B, n_pad), jnp.float32),
        in_specs=[
            pl.BlockSpec(memory_space=pltpu.MemorySpace.VMEM),  # x  (whole array)
            pl.BlockSpec(memory_space=pltpu.MemorySpace.VMEM),  # w  (whole array)
            pl.BlockSpec(memory_space=pltpu.MemorySpace.VMEM),  # b  (whole array)
        ],
        out_specs=pl.BlockSpec(memory_space=pltpu.MemorySpace.VMEM),
    )(x_bf, w_p, b_p)

    return out_p[:, :N].astype(x_flat.dtype)


def fully_connected_forward(x, weight, bias):
    """Pallas equivalent of fully_connected.forward (model == identity)."""
    B = x.shape[0]
    out_1 = x.reshape(B, -1)                       # torch.flatten(x, 1)
    out_3 = linear_pallas(out_1, weight, bias)     # self.fc_4(out_1)
    return out_1, out_3


if __name__ == "__main__":
    # Small shapes implied by the module: NCHW feature map -> flatten -> Linear
    B, C, H, W = 2, 4, 16, 16
    num_ftrs = C * H * W          # 1024
    num_classes = 32

    key = jax.random.PRNGKey(0)
    kx, kw, kb = jax.random.split(key, 3)

    x = jax.random.normal(kx, (B, C, H, W), dtype=jnp.float32)
    # Deterministic parameter init (PyTorch-Linear-like uniform bound).
    bound = 1.0 / np.sqrt(num_ftrs)
    weight = jax.random.uniform(
        kw, (num_classes, num_ftrs), minval=-bound, maxval=bound,
        dtype=jnp.float32)
    bias = jax.random.uniform(
        kb, (num_classes,), minval=-bound, maxval=bound, dtype=jnp.float32)

    out_1, out_3 = fully_connected_forward(x, weight, bias)
    jax.block_until_ready((out_1, out_3))

    # Reference check against plain JAX (bf16 matmul -> loosened tolerance).
    ref_1 = x.reshape(B, -1)
    ref_3 = ref_1 @ weight.T + bias
    assert out_1.shape == (B, num_ftrs) and out_3.shape == (B, num_classes)
    assert np.allclose(np.asarray(out_1), np.asarray(ref_1), atol=1e-5)
    assert np.allclose(np.asarray(out_3), np.asarray(ref_3), atol=2e-2, rtol=2e-2)

    print("KERNEL_OK")
</pallas_src>

<mosaic_0001>
module attributes {stable_mosaic.version = 11 : i64} {
  func.func @_fc_kernel(%arg0: memref<2x1024xbf16, #tpu.memory_space<vmem>>, %arg1: memref<128x1024xbf16, #tpu.memory_space<vmem>>, %arg2: memref<1x128xf32, #tpu.memory_space<vmem>>, %arg3: memref<2x128xf32, #tpu.memory_space<vmem>>) attributes {dimension_semantics = [], scalar_prefetch = 0 : i64, scratch_operands = 0 : i64, tpu.core_type = #tpu.core_type<tc>} {
    %c0 = arith.constant 0 : index
    %c0_0 = arith.constant 0 : index
    %0 = vector.load %arg0[%c0, %c0_0] : memref<2x1024xbf16, #tpu.memory_space<vmem>>, vector<2x1024xbf16>
    %c0_1 = arith.constant 0 : index
    %c0_2 = arith.constant 0 : index
    %1 = vector.load %arg1[%c0_1, %c0_2] : memref<128x1024xbf16, #tpu.memory_space<vmem>>, vector<128x1024xbf16>
    %cst = arith.constant dense<0.000000e+00> : vector<2x128xf32>
    %2 = tpu.matmul %0, %1, %cst {dimension_numbers = #tpu.dot_dimension_numbers<[1], [1], [0], [0], [0, 0, 1, 0], [], []>} : vector<2x1024xbf16>, vector<128x1024xbf16>, vector<2x128xf32> -> vector<2x128xf32>
    %c0_3 = arith.constant 0 : index
    %c0_4 = arith.constant 0 : index
    %3 = vector.load %arg2[%c0_3, %c0_4] : memref<1x128xf32, #tpu.memory_space<vmem>>, vector<1x128xf32>
    %4 = vector.broadcast %3 : vector<1x128xf32> to vector<2x128xf32>
    %5 = arith.addf %2, %4 : vector<2x128xf32>
    %c0_5 = arith.constant 0 : index
    %c0_6 = arith.constant 0 : index
    %6 = vector.load %arg3[%c0_5, %c0_6] : memref<2x128xf32, #tpu.memory_space<vmem>>, vector<2x128xf32>
    tpu.vector_store %arg3[%c0_5, %c0_6], %5 {strides = array<i32>} : memref<2x128xf32, #tpu.memory_space<vmem>>, vector<2x128xf32>,
    return
  }
}

</mosaic_0001>

<llo_original>
// kernel: tpu_custom_call.1
$region0: #{tpu_custom_call.1}
  #allocation0 [shape = 'u32[]', space=smem, size = 0x4, offset = 0x4, fixed_abs, tag = 'smem constant byte address 0x4 - core index']
  #allocation1 [shape = 'u32[144,128]{1,0:T(1,128)}', space=vmem, size = 0x12000, scoped, tag = 'internal scratch']
  %s0 = inlined_call_operand.hbm [shape: bf16[2,1024], index: 0, kind: input, shape index: {}]
  %s1 = inlined_call_operand.hbm [shape: bf16[128,1024], index: 1, kind: input, shape index: {}]
  %s2 = inlined_call_operand.vmem [shape: f32[1,128], index: 2, kind: input, shape index: {}]
  %s3 = inlined_call_operand.hbm [shape: f32[2,128], index: 3, kind: output, shape index: {}]
  %s4 = sld [smem:[#allocation0]]
  $region30: #{tpu_custom_call.1} parent=0
    _
  %s6 = ssub.s32 1, %s4
  %s7 = scalar_select 0, %s6, %s4
  $region1: #{tpu_custom_call.1} parent=0
    #allocation2 [shape = 'u8[4096]{0}', space=vmem, size = 0x1000, scoped, tag = 'input window, operand 0, single buffered']
    #allocation3 [shape = 's32[1]{0}', space=sflag, size = 0x4, scoped, tag = 'scoped memory for tpu_custom_call.1']
    #allocation4 [shape = 's32[1]{0}', space=sflag, size = 0x4, scoped, tag = 'scoped memory for tpu_custom_call.1']
    #allocation5 [shape = 'u8[262144]{0}', space=vmem, size = 0x40000, scoped, tag = 'input window, operand 1, single buffered']
    #allocation6 [shape = 's32[1]{0}', space=sflag, size = 0x4, scoped, tag = 'scoped memory for tpu_custom_call.1']
    #allocation7 [shape = 'u8[1024]{0}', space=vmem, size = 0x400, scoped, tag = 'output window, operand 0, single buffered']
    %8 = vsyncpa [#allocation3], 0
    %9 = vsyncpa [#allocation6], 0
    %10 = vsyncpa [#allocation4], 0
    // Predicated region
    $region2: #{tpu_custom_call.1} parent=1 // pred_check
      _
    $region3: #{tpu_custom_call.1} parent=1 // pred_check_branch
      %12 = sbr.rel (0) target = $region5
    $region4: #{tpu_custom_call.1} parent=1 // pred_region
      %s14 = ssub.s32 128, 128
      %15 = vsyncadd [#allocation3], %s14
      %s17 = sshll.u32 [#allocation2], 4
      %s18 = int_to_ptr.vmem [resolvable:$true] %s17
      %20 = dma.hbm_to_vmem [thread:$0]  %s0, 128, %s18, [#allocation3]
    $region5: #{tpu_custom_call.1} parent=1 // pred_fallthru
      _
    // Predicated region
    $region6: #{tpu_custom_call.1} parent=1 // pred_check
      _
    $region7: #{tpu_custom_call.1} parent=1 // pred_check_branch
      %22 = sbr.rel (0) target = $region9
    $region8: #{tpu_custom_call.1} parent=1 // pred_region
      %s24 = ssub.s32 8192, 8192
      %25 = vsyncadd [#allocation6], %s24
      %s26 = sshll.u32 [#allocation5], 4
      %s27 = int_to_ptr.vmem [resolvable:$true] %s26
      %32 = dma.hbm_to_vmem [thread:$0]  %s1, 8192, %s27, [#allocation6], 512, 512, 32
    $region9: #{tpu_custom_call.1} parent=1 // pred_fallthru
      _
    // Predicated region
    $region10: #{tpu_custom_call.1} parent=1 // pred_check
      _
    $region11: #{tpu_custom_call.1} parent=1 // pred_check_branch
      %34 = sbr.rel (0) target = $region13
    $region12: #{tpu_custom_call.1} parent=1 // pred_region
      _
    $region13: #{tpu_custom_call.1} parent=1 // pred_fallthru
      _
    // Predicated region
    $region14: #{tpu_custom_call.1} parent=1 // pred_check
      _
    $region15: #{tpu_custom_call.1} parent=1 // pred_check_branch
      %36 = sbr.rel (0) target = $region17
    $region16: #{tpu_custom_call.1} parent=1 // pred_region
      %37 = dma.done [#allocation3], 128
    $region17: #{tpu_custom_call.1} parent=1 // pred_fallthru
      _
    // Predicated region
    $region18: #{tpu_custom_call.1} parent=1 // pred_check
      _
    $region19: #{tpu_custom_call.1} parent=1 // pred_check_branch
      %39 = sbr.rel (0) target = $region21
    $region20: #{tpu_custom_call.1} parent=1 // pred_region
      %40 = dma.done [#allocation6], 8192
    $region21: #{tpu_custom_call.1} parent=1 // pred_fallthru
      _
    %v42 = vld [vmem:[#allocation2] sm:$0xff]
    %v43 = vld [vmem:[#allocation5] sm:$0xff]
    %v44 = vld [vmem:[#allocation5 + $0x8] sm:$0xff]
    %v45 = vld [vmem:[#allocation5 + $0x10] sm:$0xff]
    %v46 = vld [vmem:[#allocation5 + $0x18] sm:$0xff]
    %v47 = vld [vmem:[#allocation5 + $0x20] sm:$0xff]
    %v48 = vld [vmem:[#allocation5 + $0x28] sm:$0xff]
    %v49 = vld [vmem:[#allocation5 + $0x30] sm:$0xff]
    %v50 = vld [vmem:[#allocation5 + $0x38] sm:$0xff]
    %v51 = vld [vmem:[#allocation5 + $0x40] sm:$0xff]
    %v52 = vld [vmem:[#allocation5 + $0x48] sm:$0xff]
    %v53 = vld [vmem:[#allocation5 + $0x50] sm:$0xff]
    %v54 = vld [vmem:[#allocation5 + $0x58] sm:$0xff]
    %v55 = vld [vmem:[#allocation5 + $0x60] sm:$0xff]
    %v56 = vld [vmem:[#allocation5 + $0x68] sm:$0xff]
    %v57 = vld [vmem:[#allocation5 + $0x70] sm:$0xff]
    %v58 = vld [vmem:[#allocation5 + $0x78] sm:$0xff]
    %v59 = vld [vmem:[#allocation5 + $0x80] sm:$0xff]
    %v60 = vld [vmem:[#allocation5 + $0x88] sm:$0xff]
    %v61 = vld [vmem:[#allocation5 + $0x90] sm:$0xff]
    %v62 = vld [vmem:[#allocation5 + $0x98] sm:$0xff]
    %v63 = vld [vmem:[#allocation5 + $0xa0] sm:$0xff]
    %v64 = vld [vmem:[#allocation5 + $0xa8] sm:$0xff]
    %v65 = vld [vmem:[#allocation5 + $0xb0] sm:$0xff]
    %v66 = vld [vmem:[#allocation5 + $0xb8] sm:$0xff]
    %v67 = vld [vmem:[#allocation5 + $0xc0] sm:$0xff]
    %v68 = vld [vmem:[#allocation5 + $0xc8] sm:$0xff]
    %v69 = vld [vmem:[#allocation5 + $0xd0] sm:$0xff]
    %v70 = vld [vmem:[#allocation5 + $0xd8] sm:$0xff]
    %v71 = vld [vmem:[#allocation5 + $0xe0] sm:$0xff]
    %v72 = vld [vmem:[#allocation5 + $0xe8] sm:$0xff]
    %v73 = vld [vmem:[#allocation5 + $0xf0] sm:$0xff]
    %v74 = vld [vmem:[#allocation5 + $0xf8] sm:$0xff]
    %v75 = vld [vmem:[#allocation5 + $0x100] sm:$0xff]
    %v76 = vld [vmem:[#allocation5 + $0x108] sm:$0xff]
    %v77 = vld [vmem:[#allocation5 + $0x110] sm:$0xff]
    %v78 = vld [vmem:[#allocation5 + $0x118] sm:$0xff]
    %v79 = vld [vmem:[#allocation5 + $0x120] sm:$0xff]
    %v80 = vld [vmem:[#allocation5 + $0x128] sm:$0xff]
    %v81 = vld [vmem:[#allocation5 + $0x130] sm:$0xff]
    %v82 = vld [vmem:[#allocation5 + $0x138] sm:$0xff]
    %v83 = vld [vmem:[#allocation5 + $0x140] sm:$0xff]
    %v84 = vld [vmem:[#allocation5 + $0x148] sm:$0xff]
    %v85 = vld [vmem:[#allocation5 + $0x150] sm:$0xff]
    %v86 = vld [vmem:[#allocation5 + $0x158] sm:$0xff]
    %v87 = vld [vmem:[#allocation5 + $0x160] sm:$0xff]
    %v88 = vld [vmem:[#allocation5 + $0x168] sm:$0xff]
    %v89 = vld [vmem:[#allocation5 + $0x170] sm:$0xff]
    %v90 = vld [vmem:[#allocation5 + $0x178] sm:$0xff]
    %v91 = vld [vmem:[#allocation5 + $0x180] sm:$0xff]
    %v92 = vld [vmem:[#allocation5 + $0x188] sm:$0xff]
    %v93 = vld [vmem:[#allocation5 + $0x190] sm:$0xff]
    %v94 = vld [vmem:[#allocation5 + $0x198] sm:$0xff]
    %v95 = vld [vmem:[#allocation5 + $0x1a0] sm:$0xff]
    %v96 = vld [vmem:[#allocation5 + $0x1a8] sm:$0xff]
    %v97 = vld [vmem:[#allocation5 + $0x1b0] sm:$0xff]
    %v98 = vld [vmem:[#allocation5 + $0x1b8] sm:$0xff]
    %v99 = vld [vmem:[#allocation5 + $0x1c0] sm:$0xff]
    %v100 = vld [vmem:[#allocation5 + $0x1c8] sm:$0xff]
    %v101 = vld [vmem:[#allocation5 + $0x1d0] sm:$0xff]
    %v102 = vld [vmem:[#allocation5 + $0x1d8] sm:$0xff]
    %v103 = vld [vmem:[#allocation5 + $0x1e0] sm:$0xff]
    %v104 = vld [vmem:[#allocation5 + $0x1e8] sm:$0xff]
    %v105 = vld [vmem:[#allocation5 + $0x1f0] sm:$0xff]
    %v106 = vld [vmem:[#allocation5 + $0x1f8] sm:$0xff]
    %v107 = vld [vmem:[%s2] sm:$0x1]
    %v109 = vlaneseq
    %v110 = vshrl.u32 %v109, 7
    %v111 = vsub.s32 0, %v110
    %v112 = vrot.slane %v107, %v111
    %v115 = vcombine.high %v42, %v42
    %v117 = vunpack.c.l.s4 1966171168
    %v118 = vunpack.c.0.s8 %v117
    %v119 = vlaneseq
    %v120 = vshrl.u32 %v119, 7
    %v121 = vsub.s32 %v118, %v120
    %v122 = vrot.slane %v42, %v121
    %v124 = vunpack.c.l.s4 1966171168
    %v125 = vunpack.c.0.s8 %v124
    %v126 = vlaneseq
    %v127 = vshrl.u32 %v126, 7
    %v128 = vsub.s32 %v125, %v127
    %v129 = vrot.slane %v115, %v128
    %v130 = vcombine.high %v122, %v122
    %v131 = vcombine.high %v129, %v129
    %v133 = vunpack.c.l.s4 1966171168
    %v134 = vunpack.c.0.s8 %v133
    %v135 = vlaneseq
    %v136 = vshrl.u32 %v135, 7
    %v137 = vsub.s32 %v134, %v136
    %v138 = vrot.slane %v122, %v137
    %v140 = vunpack.c.l.s4 1966171168
    %v141 = vunpack.c.0.s8 %v140
    %v142 = vlaneseq
    %v143 = vshrl.u32 %v142, 7
    %v144 = vsub.s32 %v141, %v143
    %v145 = vrot.slane %v129, %v144
    %v147 = vunpack.c.l.s4 1966171168
    %v148 = vunpack.c.0.s8 %v147
    %v149 = vlaneseq
    %v150 = vshrl.u32 %v149, 7
    %v151 = vsub.s32 %v148, %v150
    %v152 = vrot.slane %v130, %v151
    %v154 = vunpack.c.l.s4 1966171168
    %v155 = vunpack.c.0.s8 %v154
    %v156 = vlaneseq
    %v157 = vshrl.u32 %v156, 7
    %v158 = vsub.s32 %v155, %v157
    %v159 = vrot.slane %v131, %v158
    %v160 = vcombine.high %v138, %v138
    %v161 = vcombine.high %v145, %v145
    %v162 = vcombine.high %v152, %v152
    %v163 = vcombine.high %v159, %v159
    %v236 = vunpack.c.l.b16 %v43
    %v237 = vunpack.c.h.b16 %v43
    %v238 = vunpack.c.l.b16 %v44
    %v239 = vunpack.c.h.b16 %v44
    %v240 = vunpack.c.l.b16 %v45
    %v241 = vunpack.c.h.b16 %v45
    %v242 = vunpack.c.l.b16 %v46
    %v243 = vunpack.c.h.b16 %v46
    %v244 = vunpack.c.l.b16 %v47
    %v245 = vunpack.c.h.b16 %v47
    %v246 = vunpack.c.l.b16 %v48
    %v247 = vunpack.c.h.b16 %v48
    %v248 = vunpack.c.l.b16 %v49
    %v249 = vunpack.c.h.b16 %v49
    %v250 = vunpack.c.l.b16 %v50
    %v251 = vunpack.c.h.b16 %v50
    %v252 = vunpack.c.l.b16 %v51
    %v253 = vunpack.c.h.b16 %v51
    %v254 = vunpack.c.l.b16 %v52
    %v255 = vunpack.c.h.b16 %v52
    %v256 = vunpack.c.l.b16 %v53
    %v257 = vunpack.c.h.b16 %v53
    %v258 = vunpack.c.l.b16 %v54
    %v259 = vunpack.c.h.b16 %v54
    %v260 = vunpack.c.l.b16 %v55
    %v261 = vunpack.c.h.b16 %v55
    %v262 = vunpack.c.l.b16 %v56
    %v263 = vunpack.c.h.b16 %v56
    %v264 = vunpack.c.l.b16 %v57
    %v265 = vunpack.c.h.b16 %v57
    %v266 = vunpack.c.l.b16 %v58
    %v267 = vunpack.c.h.b16 %v58
    %v268 = vunpack.c.l.b16 %v59
    %v269 = vunpack.c.h.b16 %v59
    %v270 = vunpack.c.l.b16 %v60
    %v271 = vunpack.c.h.b16 %v60
    %v272 = vunpack.c.l.b16 %v61
    %v273 = vunpack.c.h.b16 %v61
    %v274 = vunpack.c.l.b16 %v62
    %v275 = vunpack.c.h.b16 %v62
    %v276 = vunpack.c.l.b16 %v63
    %v277 = vunpack.c.h.b16 %v63
    %v278 = vunpack.c.l.b16 %v64
    %v279 = vunpack.c.h.b16 %v64
    %v280 = vunpack.c.l.b16 %v65
    %v281 = vunpack.c.h.b16 %v65
    %v282 = vunpack.c.l.b16 %v66
    %v283 = vunpack.c.h.b16 %v66
    %v284 = vunpack.c.l.b16 %v67
    %v285 = vunpack.c.h.b16 %v67
    %v286 = vunpack.c.l.b16 %v68
    %v287 = vunpack.c.h.b16 %v68
    %v288 = vunpack.c.l.b16 %v69
    %v289 = vunpack.c.h.b16 %v69
    %v290 = vunpack.c.l.b16 %v70
    %v291 = vunpack.c.h.b16 %v70
    %v292 = vunpack.c.l.b16 %v71
    %v293 = vunpack.c.h.b16 %v71
    %v294 = vunpack.c.l.b16 %v72
    %v295 = vunpack.c.h.b16 %v72
    %v296 = vunpack.c.l.b16 %v73
    %v297 = vunpack.c.h.b16 %v73
    %v298 = vunpack.c.l.b16 %v74
    %v299 = vunpack.c.h.b16 %v74
    %v300 = vunpack.c.l.b16 %v75
    %v301 = vunpack.c.h.b16 %v75
    %v302 = vunpack.c.l.b16 %v76
    %v303 = vunpack.c.h.b16 %v76
    %v304 = vunpack.c.l.b16 %v77
    %v305 = vunpack.c.h.b16 %v77
    %v306 = vunpack.c.l.b16 %v78
    %v307 = vunpack.c.h.b16 %v78
    %v308 = vunpack.c.l.b16 %v79
    %v309 = vunpack.c.h.b16 %v79
    %v310 = vunpack.c.l.b16 %v80
    %v311 = vunpack.c.h.b16 %v80
    %v312 = vunpack.c.l.b16 %v81
    %v313 = vunpack.c.h.b16 %v81
    %v314 = vunpack.c.l.b16 %v82
    %v315 = vunpack.c.h.b16 %v82
    %v316 = vunpack.c.l.b16 %v83
    %v317 = vunpack.c.h.b16 %v83
    %v318 = vunpack.c.l.b16 %v84
    %v319 = vunpack.c.h.b16 %v84
    %v320 = vunpack.c.l.b16 %v85
    %v321 = vunpack.c.h.b16 %v85
    %v322 = vunpack.c.l.b16 %v86
    %v323 = vunpack.c.h.b16 %v86
    %v324 = vunpack.c.l.b16 %v87
    %v325 = vunpack.c.h.b16 %v87
    %v326 = vunpack.c.l.b16 %v88
    %v327 = vunpack.c.h.b16 %v88
    %v328 = vunpack.c.l.b16 %v89
    %v329 = vunpack.c.h.b16 %v89
    %v330 = vunpack.c.l.b16 %v90
    %v331 = vunpack.c.h.b16 %v90
    %v332 = vunpack.c.l.b16 %v91
    %v333 = vunpack.c.h.b16 %v91
    %v334 = vunpack.c.l.b16 %v92
    %v335 = vunpack.c.h.b16 %v92
    %v336 = vunpack.c.l.b16 %v93
    %v337 = vunpack.c.h.b16 %v93
    %v338 = vunpack.c.l.b16 %v94
    %v339 = vunpack.c.h.b16 %v94
    %v340 = vunpack.c.l.b16 %v95
    %v341 = vunpack.c.h.b16 %v95
    %v342 = vunpack.c.l.b16 %v96
    %v343 = vunpack.c.h.b16 %v96
    %v344 = vunpack.c.l.b16 %v97
    %v345 = vunpack.c.h.b16 %v97
    %v346 = vunpack.c.l.b16 %v98
    %v347 = vunpack.c.h.b16 %v98
    %v348 = vunpack.c.l.b16 %v99
    %v349 = vunpack.c.h.b16 %v99
    %v350 = vunpack.c.l.b16 %v100
    %v351 = vunpack.c.h.b16 %v100
    %v352 = vunpack.c.l.b16 %v101
    %v353 = vunpack.c.h.b16 %v101
    %v354 = vunpack.c.l.b16 %v102
    %v355 = vunpack.c.h.b16 %v102
    %v356 = vunpack.c.l.b16 %v103
    %v357 = vunpack.c.h.b16 %v103
    %v358 = vunpack.c.l.b16 %v104
    %v359 = vunpack.c.h.b16 %v104
    %v360 = vunpack.c.l.b16 %v105
    %v361 = vunpack.c.h.b16 %v105
    %v362 = vunpack.c.l.b16 %v106
    %v363 = vunpack.c.h.b16 %v106
    %v364 = vpack.c.b16 %v244, %v236
    %v365 = vpack.c.b16 %v245, %v237
    %v366 = vpack.c.b16 %v246, %v238
    %v367 = vpack.c.b16 %v247, %v239
    %v368 = vpack.c.b16 %v248, %v240
    %v369 = vpack.c.b16 %v249, %v241
    %v370 = vpack.c.b16 %v250, %v242
    %v371 = vpack.c.b16 %v251, %v243
    %v372 = vpack.c.b16 %v260, %v252
    %v373 = vpack.c.b16 %v261, %v253
    %v374 = vpack.c.b16 %v262, %v254
    %v375 = vpack.c.b16 %v263, %v255
    %v376 = vpack.c.b16 %v264, %v256
    %v377 = vpack.c.b16 %v265, %v257
    %v378 = vpack.c.b16 %v266, %v258
    %v379 = vpack.c.b16 %v267, %v259
    %v380 = vpack.c.b16 %v276, %v268
    %v381 = vpack.c.b16 %v277, %v269
    %v382 = vpack.c.b16 %v278, %v270
    %v383 = vpack.c.b16 %v279, %v271
    %v384 = vpack.c.b16 %v280, %v272
    %v385 = vpack.c.b16 %v281, %v273
    %v386 = vpack.c.b16 %v282, %v274
    %v387 = vpack.c.b16 %v283, %v275
    %v388 = vpack.c.b16 %v292, %v284
    %v389 = vpack.c.b16 %v293, %v285
    %v390 = vpack.c.b16 %v294, %v286
    %v391 = vpack.c.b16 %v295, %v287
    %v392 = vpack.c.b16 %v296, %v288
    %v393 = vpack.c.b16 %v297, %v289
    %v394 = vpack.c.b16 %v298, %v290
    %v395 = vpack.c.b16 %v299, %v291
    %v396 = vpack.c.b16 %v308, %v300
    %v397 = vpack.c.b16 %v309, %v301
    %v398 = vpack.c.b16 %v310, %v302
    %v399 = vpack.c.b16 %v311, %v303
    %v400 = vpack.c.b16 %v312, %v304
    %v401 = vpack.c.b16 %v313, %v305
    %v402 = vpack.c.b16 %v314, %v306
    %v403 = vpack.c.b16 %v315, %v307
    %v404 = vpack.c.b16 %v324, %v316
    %v405 = vpack.c.b16 %v325, %v317
    %v406 = vpack.c.b16 %v326, %v318
    %v407 = vpack.c.b16 %v327, %v319
    %v408 = vpack.c.b16 %v328, %v320
    %v409 = vpack.c.b16 %v329, %v321
    %v410 = vpack.c.b16 %v330, %v322
    %v411 = vpack.c.b16 %v331, %v323
    %v412 = vpack.c.b16 %v340, %v332
    %v413 = vpack.c.b16 %v341, %v333
    %v414 = vpack.c.b16 %v342, %v334
    %v415 = vpack.c.b16 %v343, %v335
    %v416 = vpack.c.b16 %v344, %v336
    %v417 = vpack.c.b16 %v345, %v337
    %v418 = vpack.c.b16 %v346, %v338
    %v419 = vpack.c.b16 %v347, %v339
    %v420 = vpack.c.b16 %v356, %v348
    %v421 = vpack.c.b16 %v357, %v349
    %v422 = vpack.c.b16 %v358, %v350
    %v423 = vpack.c.b16 %v359, %v351
    %v424 = vpack.c.b16 %v360, %v352
    %v425 = vpack.c.b16 %v361, %v353
    %v426 = vpack.c.b16 %v362, %v354
    %v427 = vpack.c.b16 %v363, %v355
    %492 = vmatprep.subr.bf16.mxu0 %v365
    %493 = vmatpush1.bf16.xpose.msra.mxu0 %v364
    %494 = vmatprep.subr.bf16.mxu0 %v373
    %495 = vmatpush1.bf16.xpose.msra.mxu0 %v372
    %496 = vmatprep.subr.bf16.mxu0 %v381
    %497 = vmatpush1.bf16.xpose.msra.mxu0 %v380
    %498 = vmatprep.subr.bf16.mxu0 %v389
    %499 = vmatpush1.bf16.xpose.msra.mxu0 %v388
    %500 = vmatprep.subr.bf16.mxu0 %v397
    %501 = vmatpush1.bf16.xpose.msra.mxu0 %v396
    %502 = vmatprep.subr.bf16.mxu0 %v405
    %503 = vmatpush1.bf16.xpose.msra.mxu0 %v404
    %504 = vmatprep.subr.bf16.mxu0 %v413
    %505 = vmatpush1.bf16.xpose.msra.mxu0 %v412
    %506 = vmatprep.subr.bf16.mxu0 %v421
    %507 = vmatpush1.bf16.xpose.msra.mxu0 %v420
    %508 = vmatprep.subr.bf16.mxu0 0
    %509 = vmatpush1.bf16.xpose.msra.mxu0 0
    %510 = vmatprep.subr.bf16.mxu0 0
    %511 = vmatpush1.bf16.xpose.msra.mxu0 0
    %512 = vmatprep.subr.bf16.mxu0 0
    %513 = vmatpush1.bf16.xpose.msra.mxu0 0
    %514 = vmatprep.subr.bf16.mxu0 0
    %515 = vmatpush1.bf16.xpose.msra.mxu0 0
    %516 = vmatprep.subr.bf16.mxu0 0
    %517 = vmatpush1.bf16.xpose.msra.mxu0 0
    %518 = vmatprep.subr.bf16.mxu0 0
    %519 = vmatpush1.bf16.xpose.msra.mxu0 0
    %520 = vmatprep.subr.bf16.mxu0 0
    %521 = vmatpush1.bf16.xpose.msra.mxu0 0
    %522 = vmatprep.subr.bf16.mxu0 0
    %523 = vmatpush1.bf16.xpose.msra.mxu0 0
    %524 = vmatprep.mubr.bf16.mxu0 %v152
    %525 = vmatmul.mubr.bf16.gmra.mrb[0].mxu0 %v138
    %v526 = vpop.f32.mrb[0].mxu0
    %v527 = vadd.f32 %v112, %v526
    %v528 = vpop.f32.mrb[0].mxu0
    %v529 = vpop.f32.mrb[0].mxu0
    %v530 = vpop.f32.mrb[0].mxu0
    %531 = vdwg.mxu0
    %532 = vmatprep.subr.bf16.mxu0 %v367
    %533 = vmatpush1.bf16.xpose.msra.mxu0 %v366
    %534 = vmatprep.subr.bf16.mxu0 %v375
    %535 = vmatpush1.bf16.xpose.msra.mxu0 %v374
    %536 = vmatprep.subr.bf16.mxu0 %v383
    %537 = vmatpush1.bf16.xpose.msra.mxu0 %v382
    %538 = vmatprep.subr.bf16.mxu0 %v391
    %539 = vmatpush1.bf16.xpose.msra.mxu0 %v390
    %540 = vmatprep.subr.bf16.mxu0 %v399
    %541 = vmatpush1.bf16.xpose.msra.mxu0 %v398
    %542 = vmatprep.subr.bf16.mxu0 %v407
    %543 = vmatpush1.bf16.xpose.msra.mxu0 %v406
    %544 = vmatprep.subr.bf16.mxu0 %v415
    %545 = vmatpush1.bf16.xpose.msra.mxu0 %v414
    %546 = vmatprep.subr.bf16.mxu0 %v423
    %547 = vmatpush1.bf16.xpose.msra.mxu0 %v422
    %548 = vmatprep.subr.bf16.mxu0 0
    %549 = vmatpush1.bf16.xpose.msra.mxu0 0
    %550 = vmatprep.subr.bf16.mxu0 0
    %551 = vmatpush1.bf16.xpose.msra.mxu0 0
    %552 = vmatprep.subr.bf16.mxu0 0
    %553 = vmatpush1.bf16.xpose.msra.mxu0 0
    %554 = vmatprep.subr.bf16.mxu0 0
    %555 = vmatpush1.bf16.xpose.msra.mxu0 0
    %556 = vmatprep.subr.bf16.mxu0 0
    %557 = vmatpush1.bf16.xpose.msra.mxu0 0
    %558 = vmatprep.subr.bf16.mxu0 0
    %559 = vmatpush1.bf16.xpose.msra.mxu0 0
    %560 = vmatprep.subr.bf16.mxu0 0
    %561 = vmatpush1.bf16.xpose.msra.mxu0 0
    %562 = vmatprep.subr.bf16.mxu0 0
    %563 = vmatpush1.bf16.xpose.msra.mxu0 0
    %564 = vmatprep.mubr.bf16.mxu0 %v162
    %565 = vmatmul.mubr.bf16.gmra.mrb[0].mxu0 %v160
    %v566 = vpop.f32.mrb[0].mxu0
    %v567 = vadd.f32 %v527, %v566
    %v568 = vpop.f32.mrb[0].mxu0
    %v569 = vpop.f32.mrb[0].mxu0
    %v570 = vpop.f32.mrb[0].mxu0
    %571 = vdwg.mxu0
    %572 = vmatprep.subr.bf16.mxu0 %v369
    %573 = vmatpush1.bf16.xpose.msra.mxu0 %v368
    %574 = vmatprep.subr.bf16.mxu0 %v377
    %575 = vmatpush1.bf16.xpose.msra.mxu0 %v376
    %576 = vmatprep.subr.bf16.mxu0 %v385
    %577 = vmatpush1.bf16.xpose.msra.mxu0 %v384
    %578 = vmatprep.subr.bf16.mxu0 %v393
    %579 = vmatpush1.bf16.xpose.msra.mxu0 %v392
    %580 = vmatprep.subr.bf16.mxu0 %v401
    %581 = vmatpush1.bf16.xpose.msra.mxu0 %v400
    %582 = vmatprep.subr.bf16.mxu0 %v409
    %583 = vmatpush1.bf16.xpose.msra.mxu0 %v408
    %584 = vmatprep.subr.bf16.mxu0 %v417
    %585 = vmatpush1.bf16.xpose.msra.mxu0 %v416
    %586 = vmatprep.subr.bf16.mxu0 %v425
    %587 = vmatpush1.bf16.xpose.msra.mxu0 %v424
    %588 = vmatprep.subr.bf16.mxu0 0
    %589 = vmatpush1.bf16.xpose.msra.mxu0 0
    %590 = vmatprep.subr.bf16.mxu0 0
    %591 = vmatpush1.bf16.xpose.msra.mxu0 0
    %592 = vmatprep.subr.bf16.mxu0 0
    %593 = vmatpush1.bf16.xpose.msra.mxu0 0
    %594 = vmatprep.subr.bf16.mxu0 0
    %595 = vmatpush1.bf16.xpose.msra.mxu0 0
    %596 = vmatprep.subr.bf16.mxu0 0
    %597 = vmatpush1.bf16.xpose.msra.mxu0 0
    %598 = vmatprep.subr.bf16.mxu0 0
    %599 = vmatpush1.bf16.xpose.msra.mxu0 0
    %600 = vmatprep.subr.bf16.mxu0 0
    %601 = vmatpush1.bf16.xpose.msra.mxu0 0
    %602 = vmatprep.subr.bf16.mxu0 0
    %603 = vmatpush1.bf16.xpose.msra.mxu0 0
    %604 = vmatprep.mubr.bf16.mxu0 %v159
    %605 = vmatmul.mubr.bf16.gmra.mrb[0].mxu0 %v145
    %v606 = vpop.f32.mrb[0].mxu0
    %v607 = vadd.f32 %v567, %v606
    %v608 = vpop.f32.mrb[0].mxu0
    %v609 = vpop.f32.mrb[0].mxu0
    %v610 = vpop.f32.mrb[0].mxu0
    %611 = vdwg.mxu0
    %612 = vmatprep.subr.bf16.mxu0 %v371
    %613 = vmatpush1.bf16.xpose.msra.mxu0 %v370
    %614 = vmatprep.subr.bf16.mxu0 %v379
    %615 = vmatpush1.bf16.xpose.msra.mxu0 %v378
    %616 = vmatprep.subr.bf16.mxu0 %v387
    %617 = vmatpush1.bf16.xpose.msra.mxu0 %v386
    %618 = vmatprep.subr.bf16.mxu0 %v395
    %619 = vmatpush1.bf16.xpose.msra.mxu0 %v394
    %620 = vmatprep.subr.bf16.mxu0 %v403
    %621 = vmatpush1.bf16.xpose.msra.mxu0 %v402
    %622 = vmatprep.subr.bf16.mxu0 %v411
    %623 = vmatpush1.bf16.xpose.msra.mxu0 %v410
    %624 = vmatprep.subr.bf16.mxu0 %v419
    %625 = vmatpush1.bf16.xpose.msra.mxu0 %v418
    %626 = vmatprep.subr.bf16.mxu0 %v427
    %627 = vmatpush1.bf16.xpose.msra.mxu0 %v426
    %628 = vmatprep.subr.bf16.mxu0 0
    %629 = vmatpush1.bf16.xpose.msra.mxu0 0
    %630 = vmatprep.subr.bf16.mxu0 0
    %631 = vmatpush1.bf16.xpose.msra.mxu0 0
    %632 = vmatprep.subr.bf16.mxu0 0
    %633 = vmatpush1.bf16.xpose.msra.mxu0 0
    %634 = vmatprep.subr.bf16.mxu0 0
    %635 = vmatpush1.bf16.xpose.msra.mxu0 0
    %636 = vmatprep.subr.bf16.mxu0 0
    %637 = vmatpush1.bf16.xpose.msra.mxu0 0
    %638 = vmatprep.subr.bf16.mxu0 0
    %639 = vmatpush1.bf16.xpose.msra.mxu0 0
    %640 = vmatprep.subr.bf16.mxu0 0
    %641 = vmatpush1.bf16.xpose.msra.mxu0 0
    %642 = vmatprep.subr.bf16.mxu0 0
    %643 = vmatpush1.bf16.xpose.msra.mxu0 0
    %644 = vmatprep.mubr.bf16.mxu0 %v163
    %645 = vmatmul.mubr.bf16.gmra.mrb[0].mxu0 %v161
    %v646 = vpop.f32.mrb[0].mxu0
    %v647 = vadd.f32 %v607, %v646
    %v648 = vpop.f32.mrb[0].mxu0
    %v649 = vpop.f32.mrb[0].mxu0
    %v650 = vpop.f32.mrb[0].mxu0
    %651 = vdwg.mxu0
    %652 = vst [vmem:[#allocation7] sm:$0x3] %v647
    // Predicated region
    $region22: #{tpu_custom_call.1} parent=1 // pred_check
      _
    $region23: #{tpu_custom_call.1} parent=1 // pred_check_branch
      %654 = sbr.rel (0) target = $region25
    $region24: #{tpu_custom_call.1} parent=1 // pred_region
      %s656 = ssub.s32 32, 32
      %657 = vsyncadd [#allocation4], %s656
      %s659 = sshll.u32 [#allocation7], 4
      %s660 = int_to_ptr.vmem [resolvable:$true] %s659
      %662 = dma.vmem_to_hbm [thread:$0]  %s660, 32, %s3, [#allocation4]
    $region25: #{tpu_custom_call.1} parent=1 // pred_fallthru
      _
    // Predicated region
    $region26: #{tpu_custom_call.1} parent=1 // pred_check
      _
    $region27: #{tpu_custom_call.1} parent=1 // pred_check_branch
      %664 = sbr.rel (0) target = $region29
    $region28: #{tpu_custom_call.1} parent=1 // pred_region
      %665 = dma.done [#allocation4], 32
    $region29: #{tpu_custom_call.1} parent=1 // pred_fallthru
      _
    %666 = vsyncpa [#allocation3], 1
    %667 = vsyncpa [#allocation6], 1
    %668 = vsyncpa [#allocation4], 1

</llo_original>
